<compile_context>
chip_gen: v5e
topology: v5e:2x2
jax: 0.10.0
libtpu: 0.0.40
codegen_flags: <defaults>
</compile_context>

<pallas_src>
import functools

import numpy as np

import jax
import jax.numpy as jnp
from jax.experimental import pallas as pl
from jax.experimental.pallas import tpu as pltpu


def _round_up(x, m):
    return ((x + m - 1) // m) * m


def _cdiv(a, b):
    return -(-a // b)


# ----------------------------------------------------------------------------
# pltpu.roll shift-direction probe (lazy + cached; the conv only needs
# "roll left by r", i.e. out[j] = in[j + r]).
# ----------------------------------------------------------------------------
@functools.lru_cache(maxsize=None)
def _roll_is_jnp_like():
    def kern(x_ref, o_ref):
        o_ref[...] = pltpu.roll(x_ref[...], 1, axis=1)

    x = jnp.broadcast_to(jnp.arange(128, dtype=jnp.float32), (8, 128))
    out = pl.pallas_call(
        kern, out_shape=jax.ShapeDtypeStruct((8, 128), jnp.float32))(x)
    # jnp.roll-like: out[0] == in[-1] == 127 ; opposite: out[0] == in[1] == 1
    return bool(out[0, 0] > 64.0)


# ----------------------------------------------------------------------------
# Linear (fc): out = x @ w + b, lane-dense output, exactly 2-way column split.
# ----------------------------------------------------------------------------
def _linear_kernel(x_ref, w_ref, b_ref, o_ref):
    o_ref[...] = (
        jnp.dot(x_ref[...], w_ref[...], preferred_element_type=jnp.float32)
        + b_ref[...])


def linear(x, w_bf16, b_row):
    B, K = x.shape
    N = w_bf16.shape[1]
    nc = N // 2 if (N % 2 == 0 and (N // 2) % 128 == 0) else N
    return pl.pallas_call(
        _linear_kernel,
        out_shape=jax.ShapeDtypeStruct((B, N), jnp.float32),
        grid=(N // nc,),
        in_specs=[
            pl.BlockSpec((B, K), lambda i: (0, 0)),
            pl.BlockSpec((K, nc), lambda i: (0, i)),
            pl.BlockSpec((1, nc), lambda i: (0, i)),
        ],
        out_specs=pl.BlockSpec((B, nc), lambda i: (0, i)),
        compiler_params=pltpu.CompilerParams(
            dimension_semantics=("parallel",)),
    )(x.astype(jnp.bfloat16), w_bf16, b_row)


# ----------------------------------------------------------------------------
# ConvTranspose3d with kernel_size == stride == k : batch folded into lanes.
# ----------------------------------------------------------------------------
def _deconv_kernel(x_ref, w_ref, b_ref, o_ref):
    o_ref[...] = (
        jnp.dot(w_ref[...], x_ref[...], preferred_element_type=jnp.float32)
        + b_ref[...])


def conv_transpose3d(x, w_r, b_r, k):
    """x: (N, Cin, D, H, W) f32; w_r: (Cout*k^3, Cin) bf16; b_r: (R, 1) f32."""
    N, Cin, D, H, W = x.shape
    R = w_r.shape[0]
    Cout = R // (k ** 3)
    L = D * H * W
    xf = (x.reshape(N, Cin, L).transpose(1, 0, 2)
          .reshape(Cin, N * L).astype(jnp.bfloat16))
    out = pl.pallas_call(
        _deconv_kernel,
        out_shape=jax.ShapeDtypeStruct((R, N * L), jnp.float32),
        grid=(1,),
        in_specs=[
            pl.BlockSpec((Cin, N * L), lambda i: (0, 0)),
            pl.BlockSpec((R, Cin), lambda i: (0, 0)),
            pl.BlockSpec((R, 1), lambda i: (0, 0)),
        ],
        out_specs=pl.BlockSpec((R, N * L), lambda i: (0, 0)),
    )(xf, w_r, b_r)
    # pixel shuffle: (N, Cout, kd, kh, kw, D, H, W) -> (N, Cout, D*k, H*k, W*k)
    out = out.reshape(R, N, L).transpose(1, 0, 2)
    out = out.reshape(N, Cout, k, k, k, D, H, W)
    out = out.transpose(0, 1, 5, 2, 6, 3, 7, 4)
    return out.reshape(N, Cout, D * k, H * k, W * k)


def conv_transpose3d_matched(x, w_r, b_r, k, target_spatial):
    """self.upX(x) followed by self.pad_to_match(., target).  The deconv input
    is pre-cropped to the voxels that survive the subsequent crop.
    (Index math verified against F.pad-negative-crop semantics for every
    shape combination hit by this network.)"""
    in_sp = x.shape[2:]
    starts, stops = [], []
    pad_cfg = [(0, 0, 0), (0, 0, 0)]
    for ax in range(3):
        s_in = int(in_sp[ax])
        s_out = s_in * k
        t = int(target_spatial[ax])
        diff = t - s_out
        lo = diff // 2                       # same python // the module uses
        o_start = max(0, -lo)                # up-output coords that survive
        o_end = min(s_out, t - lo)
        i0 = min(o_start // k, s_in - 1)
        i1 = min(max(_cdiv(o_end, k), i0 + 1), s_in)
        starts.append(i0)
        stops.append(i1)
        new_lo = lo + i0 * k
        pad_cfg.append((new_lo, t - new_lo - (i1 - i0) * k, 0))
    xs = x[:, :, starts[0]:stops[0], starts[1]:stops[1], starts[2]:stops[2]]
    out = conv_transpose3d(xs, w_r, b_r, k)
    return jax.lax.pad(out, jnp.zeros((), out.dtype), pad_cfg)


def pad_to_match(x, target_spatial):
    """F.pad-style symmetric pad (or crop) of the spatial dims of NCDHW x."""
    cfg = [(0, 0, 0), (0, 0, 0)]
    for ax in range(3):
        diff = int(target_spatial[ax]) - x.shape[2 + ax]
        lo = diff // 2
        cfg.append((lo, diff - lo, 0))
    return jax.lax.pad(x, jnp.zeros((), x.dtype), cfg)


# ----------------------------------------------------------------------------
# Fused Conv3d(k=3, pad=1, bias=False) [+ BatchNorm3d(batch stats) + ReLU]
#   - in-kernel im2col, 27 taps stacked along K, ONE matmul per voxel chunk
#   - conv output stays in the VMEM output block; BN stats + normalize + ReLU
#     happen before it is ever written back to HBM
# ----------------------------------------------------------------------------
def _make_conv3d_kernel(n_batch, cin, cout, qc, n_chunks, offsets,
                        fuse_bn, inv_count):
    ww = qc + 128
    roll_like_jnp = _roll_is_jnp_like()

    def roll_left(x, r):
        if r == 0:
            return x
        return pltpu.roll(x, (ww - r) if roll_like_jnp else r, axis=1)

    def kernel(*refs):
        if fuse_bn:
            x_ref, w_ref, g_ref, bt_ref, m_ref, o_ref, im_ref = refs
        else:
            x_ref, w_ref, o_ref, im_ref = refs

        # ---- conv phase: stacked-K im2col + one MXU matmul per chunk -------
        for n in range(n_batch):
            for c in range(n_chunks):
                q0 = c * qc
                for t, off in enumerate(offsets):
                    a = (off // 128) * 128           # 128-aligned part
                    r = off - a                      # residual (<128) via roll
                    if r == 0:
                        im_ref[t * cin:(t + 1) * cin, :] = (
                            x_ref[n, :, q0 + a:q0 + a + qc])
                    else:
                        xw = x_ref[n, :, q0 + a:q0 + a + ww]
                        im_ref[t * cin:(t + 1) * cin, :] = (
                            roll_left(xw, r)[:, :qc])
                o_ref[n, :, q0:q0 + qc] = jnp.dot(
                    w_ref[...], im_ref[...],
                    preferred_element_type=jnp.float32)

        # ---- fused BatchNorm3d (biased batch stats over valid voxels) + ReLU
        if fuse_bn:
            m = m_ref[...]                            # (1, P) validity mask
            s = jnp.zeros((cout, 1), jnp.float32)
            for n in range(n_batch):
                s = s + jnp.sum(o_ref[n] * m, axis=1, keepdims=True)
            mean = s * inv_count
            v = jnp.zeros((cout, 1), jnp.float32)
            for n in range(n_batch):
                d = (o_ref[n] - mean) * m
                v = v + jnp.sum(d * d, axis=1, keepdims=True)
            scale = g_ref[...] * jax.lax.rsqrt(v * inv_count + 1e-5)
            shift = bt_ref[...] - mean * scale
            for n in range(n_batch):
                o_ref[n] = jnp.maximum(o_ref[n] * scale + shift, 0.0)

    return kernel


def conv3d_3x3(x, w_packed, bn=None):
    """x: (N, Cin, D, H, W) f32.  w_packed: (Cout, 27*Cin) bf16 with the
    stacked-K dim ordered (kd, kh, kw, cin).  bn: optional (gamma, beta),
    each (Cout, 1) f32 -> fused training-mode BatchNorm3d + ReLU."""
    N, Cin, D, H, W = x.shape
    Cout = w_packed.shape[0]
    Dp, Hp, Wp = D + 2, H + 2, W + 2
    q_need = D * Hp * Wp                    # compute on the padded flat grid
    qc = min(4096, _round_up(q_need, 256))  # multiple of 256 (MXU friendly)
    n_chunks = _cdiv(q_need, qc)
    p_out = n_chunks * qc
    off_max = 2 * Hp * Wp + 2 * Wp + 2
    p_in = p_out + (off_max // 128) * 128 + 128
    # extra tail slack carried as depth padding -> one jnp.pad + one cast
    d_extra = _cdiv(max(0, p_in - Dp * Hp * Wp), Hp * Wp)
    p_flat = (Dp + d_extra) * Hp * Wp
    xf = jnp.pad(x, ((0, 0), (0, 0), (1, 1 + d_extra), (1, 1), (1, 1)))
    xf = xf.astype(jnp.bfloat16).reshape(N, Cin, p_flat)

    offsets = tuple(kd * Hp * Wp + kh * Wp + kw
                    for kd in range(3) for kh in range(3) for kw in range(3))

    fuse_bn = bn is not None
    kernel = _make_conv3d_kernel(N, Cin, Cout, qc, n_chunks, offsets,
                                 fuse_bn, 1.0 / float(N * D * H * W))

    in_arrays = [xf, w_packed]
    in_specs = [
        pl.BlockSpec((N, Cin, p_flat), lambda i: (0, 0, 0)),
        pl.BlockSpec((Cout, 27 * Cin), lambda i: (0, 0)),
    ]
    if fuse_bn:
        gamma, beta = bn
        qs = np.arange(p_out)
        valid = ((qs < q_need)
                 & (((qs // Wp) % Hp) < H)
                 & ((qs % Wp) < W))
        assert int(valid.sum()) == D * H * W
        mask = jnp.asarray(valid.astype(np.float32).reshape(1, p_out))
        in_arrays += [gamma, beta, mask]
        in_specs += [
            pl.BlockSpec((Cout, 1), lambda i: (0, 0)),
            pl.BlockSpec((Cout, 1), lambda i: (0, 0)),
            pl.BlockSpec((1, p_out), lambda i: (0, 0)),
        ]

    out = pl.pallas_call(
        kernel,
        out_shape=jax.ShapeDtypeStruct((N, Cout, p_out), jnp.float32),
        grid=(1,),
        in_specs=in_specs,
        out_specs=pl.BlockSpec((N, Cout, p_out), lambda i: (0, 0, 0)),
        scratch_shapes=[pltpu.VMEM((27 * Cin, qc), jnp.bfloat16)],
    )(*in_arrays)

    out = out[:, :, :q_need].reshape(N, Cout, D, Hp, Wp)
    return out[:, :, :, :H, :W]


# ----------------------------------------------------------------------------
# Full forward pass (same op order as the PyTorch module)
# ----------------------------------------------------------------------------
def decoder_forward(packed, x, x0, x1, x2, x3, x4):
    B = x.shape[0]
    h = linear(x, packed["fc_w"], packed["fc_b"])                 # (B, 5120)
    h = h.reshape(B, 64, 4, 5, 4)                                 # == .view()

    h = conv_transpose3d_matched(h, *packed["up4"], 2, x4.shape[2:])
    h = jnp.concatenate([h, x4], axis=1)                          # 128 ch
    h = conv3d_3x3(h, packed["conv4"], packed["bn4"])             # conv+BN+ReLU

    h = pad_to_match(h, x3.shape[2:])
    h = conv3d_3x3(h, packed["conv3"], packed["bn3"])

    h = conv_transpose3d_matched(h, *packed["up2"], 3, x2.shape[2:])
    h = conv3d_3x3(h, packed["conv2"], packed["bn2"])

    h = conv_transpose3d_matched(h, *packed["up1"], 3, x1.shape[2:])
    h = jnp.concatenate([h, x1], axis=1)                          # 16 ch
    h = conv_transpose3d_matched(h, *packed["up0"], 2, x0.shape[2:])
    h = jnp.concatenate([h, x0], axis=1)                          # 16 ch
    h = conv3d_3x3(h, packed["conv0"], None)                      # 1 ch, no BN
    return h                                                      # NCDHW


# ----------------------------------------------------------------------------
# Parameters: PyTorch-layout init + one-time packing (outside jit)
# ----------------------------------------------------------------------------
def init_params(key):
    ks = jax.random.split(key, 16)
    s = 0.05
    f32 = jnp.float32
    return {
        "fc_w": jax.random.normal(ks[0], (5120, 512), f32) * s,
        "fc_b": jax.random.normal(ks[1], (5120,), f32) * s,
        "up4_w": jax.random.normal(ks[2], (64, 64, 2, 2, 2), f32) * s,
        "up4_b": jax.random.normal(ks[3], (64,), f32) * s,
        "conv4_w": jax.random.normal(ks[4], (32, 128, 3, 3, 3), f32) * s,
        "bn4_g": jnp.ones((32,), f32), "bn4_b": jnp.zeros((32,), f32),
        "conv3_w": jax.random.normal(ks[5], (16, 32, 3, 3, 3), f32) * s,
        "bn3_g": jnp.ones((16,), f32), "bn3_b": jnp.zeros((16,), f32),
        "up2_w": jax.random.normal(ks[6], (16, 16, 3, 3, 3), f32) * s,
        "up2_b": jax.random.normal(ks[7], (16,), f32) * s,
        "conv2_w": jax.random.normal(ks[8], (8, 16, 3, 3, 3), f32) * s,
        "bn2_g": jnp.ones((8,), f32), "bn2_b": jnp.zeros((8,), f32),
        "up1_w": jax.random.normal(ks[9], (8, 8, 3, 3, 3), f32) * s,
        "up1_b": jax.random.normal(ks[10], (8,), f32) * s,
        "up0_w": jax.random.normal(ks[11], (16, 8, 2, 2, 2), f32) * s,
        "up0_b": jax.random.normal(ks[12], (8,), f32) * s,
        "conv0_w": jax.random.normal(ks[13], (1, 16, 3, 3, 3), f32) * s,
    }


def pack_params(p):
    """One-time weight packing (transpose / reshape / cast) outside the jit."""
    f32 = jnp.float32

    def conv_pack(w):                     # (Cout, Cin, 3,3,3) -> (Cout, 27*Cin)
        co, ci = int(w.shape[0]), int(w.shape[1])
        return (jnp.transpose(w, (0, 2, 3, 4, 1))
                .reshape(co, 27 * ci).astype(jnp.bfloat16))

    def deconv_pack(w, b, k):             # (Cin, Cout, k,k,k) -> (Cout*k^3, Cin)
        ci, co = int(w.shape[0]), int(w.shape[1])
        r = co * k ** 3
        wr = (jnp.transpose(w, (1, 2, 3, 4, 0))
              .reshape(r, ci).astype(jnp.bfloat16))
        br = jnp.repeat(b, k ** 3).reshape(r, 1).astype(f32)
        return (wr, br)

    def bn_pack(g, b):
        return (g.reshape(-1, 1).astype(f32), b.reshape(-1, 1).astype(f32))

    return {
        "fc_w": p["fc_w"].T.astype(jnp.bfloat16),
        "fc_b": p["fc_b"].reshape(1, -1).astype(f32),
        "up4": deconv_pack(p["up4_w"], p["up4_b"], 2),
        "up2": deconv_pack(p["up2_w"], p["up2_b"], 3),
        "up1": deconv_pack(p["up1_w"], p["up1_b"], 3),
        "up0": deconv_pack(p["up0_w"], p["up0_b"], 2),
        "conv4": conv_pack(p["conv4_w"]),
        "conv3": conv_pack(p["conv3_w"]),
        "conv2": conv_pack(p["conv2_w"]),
        "conv0": conv_pack(p["conv0_w"]),
        "bn4": bn_pack(p["bn4_g"], p["bn4_b"]),
        "bn3": bn_pack(p["bn3_g"], p["bn3_b"]),
        "bn2": bn_pack(p["bn2_g"], p["bn2_b"]),
    }


if __name__ == "__main__":
    key = jax.random.PRNGKey(0)
    kp, kx, k0, k1, k2, k3, k4 = jax.random.split(key, 7)
    params = init_params(kp)
    packed = pack_params(params)           # one-time, outside jit

    # Small skip-connection shapes consistent with the forward pass
    # (F.pad with negative diffs == crop, exactly as the module computes it).
    x = jax.random.normal(kx, (2, 512), jnp.float32)
    x0 = jax.random.normal(k0, (2, 8, 24, 24, 24), jnp.float32)
    x1 = jax.random.normal(k1, (2, 8, 20, 20, 20), jnp.float32)
    x2 = jax.random.normal(k2, (2, 4, 18, 18, 18), jnp.float32)
    x3 = jax.random.normal(k3, (2, 16, 8, 8, 8), jnp.float32)
    x4 = jax.random.normal(k4, (2, 64, 6, 8, 6), jnp.float32)

    _roll_is_jnp_like()                    # warm the (lazy) roll-sign probe

    fwd = jax.jit(decoder_forward)
    out = jax.block_until_ready(fwd(packed, x, x0, x1, x2, x3, x4))

    assert out.shape == (2, 1, 24, 24, 24), out.shape
    assert bool(jnp.all(jnp.isfinite(out)))
    print("KERNEL_OK")
</pallas_src>

<mosaic_0001>
module attributes {stable_mosaic.version = 11 : i64} {
  func.func @kern(%arg0: memref<8x128xf32, #tpu.memory_space<vmem>>, %arg1: memref<8x128xf32, #tpu.memory_space<vmem>>) attributes {dimension_semantics = [], scalar_prefetch = 0 : i64, scratch_operands = 0 : i64, tpu.core_type = #tpu.core_type<tc>} {
    %c0 = arith.constant 0 : index
    %c0_0 = arith.constant 0 : index
    %0 = vector.load %arg0[%c0, %c0_0] : memref<8x128xf32, #tpu.memory_space<vmem>>, vector<8x128xf32>
    %c1_i32 = arith.constant 1 : i32
    %1 = tpu.dynamic_rotate %0 by %c1_i32 dim 1 : vector<8x128xf32>, i32 -> vector<8x128xf32>
    %c0_1 = arith.constant 0 : index
    %c0_2 = arith.constant 0 : index
    %2 = vector.load %arg1[%c0_1, %c0_2] : memref<8x128xf32, #tpu.memory_space<vmem>>, vector<8x128xf32>
    tpu.vector_store %arg1[%c0_1, %c0_2], %1 {strides = array<i32>} : memref<8x128xf32, #tpu.memory_space<vmem>>, vector<8x128xf32>,
    return
  }
}

</mosaic_0001>

<llo_original>
// kernel: tpu_custom_call.1
$region0: #{tpu_custom_call.1}
  #allocation0 [shape = 'u32[]', space=smem, size = 0x4, offset = 0x4, fixed_abs, tag = 'smem constant byte address 0x4 - core index']
  #allocation1 [shape = 'u32[72,128]{1,0:T(1,128)}', space=vmem, size = 0x9000, scoped, tag = 'internal scratch']
  %s0 = inlined_call_operand.hbm [shape: f32[8,128], index: 0, kind: input, shape index: {}]
  %s1 = inlined_call_operand.hbm [shape: f32[8,128], index: 1, kind: output, shape index: {}]
  %s2 = sld [smem:[#allocation0]]
  $region18: #{tpu_custom_call.1} parent=0
    _
  %s4 = ssub.s32 1, %s2
  %s5 = scalar_select 0, %s4, %s2
  $region1: #{tpu_custom_call.1} parent=0
    #allocation2 [shape = 'u8[4096]{0}', space=vmem, size = 0x1000, scoped, tag = 'input window, operand 0, single buffered']
    #allocation3 [shape = 's32[1]{0}', space=sflag, size = 0x4, scoped, tag = 'scoped memory for tpu_custom_call.1']
    #allocation4 [shape = 's32[1]{0}', space=sflag, size = 0x4, scoped, tag = 'scoped memory for tpu_custom_call.1']
    #allocation5 [shape = 'u8[4096]{0}', space=vmem, size = 0x1000, scoped, tag = 'output window, operand 0, single buffered']
    %6 = vsyncpa [#allocation3], 0
    %7 = vsyncpa [#allocation4], 0
    // Predicated region
    $region2: #{tpu_custom_call.1} parent=1 // pred_check
      _
    $region3: #{tpu_custom_call.1} parent=1 // pred_check_branch
      %9 = sbr.rel (0) target = $region5
    $region4: #{tpu_custom_call.1} parent=1 // pred_region
      %11 = vsyncadd [#allocation3], 0
      %s13 = sshll.u32 %s0, 4
      %s14 = int_to_ptr.hbm [resolvable:$true] %s13
      %s15 = sshll.u32 [#allocation2], 4
      %s16 = int_to_ptr.vmem [resolvable:$true] %s15
      %18 = dma.hbm_to_vmem [thread:$0]  %s14, 128, %s16, [#allocation3]
    $region5: #{tpu_custom_call.1} parent=1 // pred_fallthru
      _
    // Predicated region
    $region6: #{tpu_custom_call.1} parent=1 // pred_check
      _
    $region7: #{tpu_custom_call.1} parent=1 // pred_check_branch
      %20 = sbr.rel (0) target = $region9
    $region8: #{tpu_custom_call.1} parent=1 // pred_region
      %22 = dma.done [#allocation3], 128
    $region9: #{tpu_custom_call.1} parent=1 // pred_fallthru
      _
    %v23 = vld [vmem:[#allocation2] sm:$0xff]
    %24 = vrot.lane.b32.xlu0 %v23, 1
    %v25 = vpop.permute.xlu0 %24
    %26 = vst [vmem:[#allocation5] sm:$0xff] %v25
    // Predicated region
    $region10: #{tpu_custom_call.1} parent=1 // pred_check
      _
    $region11: #{tpu_custom_call.1} parent=1 // pred_check_branch
      %28 = sbr.rel (0) target = $region13
    $region12: #{tpu_custom_call.1} parent=1 // pred_region
      %30 = vsyncadd [#allocation4], 0
      %s32 = sshll.u32 [#allocation5], 4
      %s33 = int_to_ptr.vmem [resolvable:$true] %s32
      %s34 = sshll.u32 %s1, 4
      %s35 = int_to_ptr.hbm [resolvable:$true] %s34
      %37 = dma.vmem_to_hbm [thread:$0]  %s33, 128, %s35, [#allocation4]
    $region13: #{tpu_custom_call.1} parent=1 // pred_fallthru
      _
    // Predicated region
    $region14: #{tpu_custom_call.1} parent=1 // pred_check
      _
    $region15: #{tpu_custom_call.1} parent=1 // pred_check_branch
      %39 = sbr.rel (0) target = $region17
    $region16: #{tpu_custom_call.1} parent=1 // pred_region
      %41 = dma.done [#allocation4], 128
    $region17: #{tpu_custom_call.1} parent=1 // pred_fallthru
      _
    %42 = vsyncpa [#allocation3], 1
    %43 = vsyncpa [#allocation4], 1

</llo_original>
